<compile_context>
chip_gen: v7x
topology: tpu7x:2x2x1
jax: 0.10.0
libtpu: 0.0.40
codegen_flags: <defaults>
</compile_context>

<pallas_src>
import functools

import jax
import jax.numpy as jnp
from jax.experimental import pallas as pl
from jax.experimental.pallas import tpu as pltpu

EPS = 1e-6


def _mention_type_encoder_kernel(ids_ref, x_ref, table_ref, gb_ref, o_ref, *, eps):
    # ids_ref:   (TN, 1)  int32 mention type ids tile
    # x_ref:     (TN, H)  mention embeddings tile
    # table_ref: (T,  H)  full embedding table
    # gb_ref:    (2,  H)  row 0 = gamma (a_2), row 1 = beta (b_2), f32
    x = x_ref[...].astype(jnp.float32)                     # (TN, H)
    ids = ids_ref[...]                                     # (TN, 1) int32
    tn, h = x.shape
    num_types = table_ref.shape[0]

    # Embedding lookup as a one-hot matmul (MXU friendly, avoids VMEM gather).
    # One-hot selection is exact in any float dtype, so run the matmul in the
    # table's dtype and accumulate in f32.
    iota_t = jax.lax.broadcasted_iota(jnp.int32, (tn, num_types), 1)
    one_hot = (ids == iota_t).astype(table_ref.dtype)      # (TN, T)
    type_emb = jnp.dot(one_hot, table_ref[...],
                       preferred_element_type=jnp.float32)  # (TN, H) f32

    out = x + type_emb

    # Two-pass (centered) statistics: no catastrophic cancellation.
    mean = jnp.sum(out, axis=-1, keepdims=True) * (1.0 / h)        # (TN, 1)
    c = out - mean
    var = jnp.sum(c * c, axis=-1, keepdims=True) * (1.0 / (h - 1))  # unbiased
    std = jnp.sqrt(var)

    # TN reciprocals instead of TN*H divides; approx=False keeps exact parity.
    inv = pl.reciprocal(std + eps, approx=False)           # (TN, 1)

    gb = gb_ref[...].astype(jnp.float32)                   # (2, H)
    gamma = gb[0:1, :]
    beta = gb[1:2, :]

    # TODO(synk): training-mode dropout (p=0.1) not implemented; eval-mode identity.
    o_ref[...] = (c * inv * gamma + beta).astype(o_ref.dtype)


def mention_type_encoder(batch_mention_emb, mention_type_ids, emb_table,
                         gamma, beta, *, tile_n=None):
    """batch_mention_emb: [N, H]; mention_type_ids: [N] int."""
    x = jnp.asarray(batch_mention_emb)
    n, h = x.shape
    num_types = emb_table.shape[0]
    out_dtype = x.dtype

    ids2d = jnp.asarray(mention_type_ids, dtype=jnp.int32).reshape(n, 1)
    gb = jnp.stack([jnp.asarray(gamma, dtype=jnp.float32).reshape(h),
                    jnp.asarray(beta, dtype=jnp.float32).reshape(h)], axis=0)  # (2, H)

    # ---- Generation-aware VMEM budget / default tile size -------------------
    try:
        info = pltpu.get_tpu_info()
        vmem_cap = int(getattr(info, "vmem_capacity_bytes", 0)) or (64 << 20)
    except Exception:
        vmem_cap = 64 << 20                     # conservative (v7x-sized)
    if vmem_cap >= (96 << 20):                  # v5e / v6e: 128 MiB physical
        vmem_budget = 96 << 20
        default_tile = 1024
    else:                                       # v7x: 64 MiB physical
        vmem_budget = 48 << 20
        default_tile = 512
    tile_cap = tile_n if tile_n is not None else default_tile

    # Row alignment depends on packing (2 rows/sublane for bf16, 4 for 8-bit).
    itemsize = jnp.dtype(out_dtype).itemsize
    row_align = 8 if itemsize >= 4 else (16 if itemsize == 2 else 32)

    # VMEM accounting per row of a tile: double-buffered x tile + out tile,
    # ids, plus ~4 full-width f32 compiler temporaries (out, type_emb, c, y).
    ix = itemsize
    it = jnp.dtype(emb_table.dtype).itemsize
    per_row = h * (2 * ix + 2 * ix + 4 * 4) + 2 * 4 + 8
    invariant = 2 * (num_types * h * it) + 2 * (2 * h * 4)
    tile_cap_vmem = max((vmem_budget - invariant) // per_row, row_align)
    tile_cap_vmem = max((tile_cap_vmem // row_align) * row_align, row_align)
    tile_cap = max(min(tile_cap, tile_cap_vmem), row_align)

    # Balanced tiles; force >= 2 grid steps when possible (v7x megacore).
    min_tiles = 2 if n >= 2 * row_align else 1
    num_tiles = max(pl.cdiv(n, tile_cap), min_tiles)
    eff_tile = pl.cdiv(pl.cdiv(n, num_tiles), row_align) * row_align
    if eff_tile >= n:
        eff_tile = n                            # block == full dim is always legal
    grid = (pl.cdiv(n, eff_tile),)

    needed = invariant + eff_tile * per_row
    vmem_limit = int(min(max(int(needed * 1.5), 32 << 20), vmem_budget))

    out = pl.pallas_call(
        functools.partial(_mention_type_encoder_kernel, eps=EPS),
        out_shape=jax.ShapeDtypeStruct((n, h), out_dtype),
        grid=grid,
        in_specs=[
            pl.BlockSpec((eff_tile, 1), lambda i: (i, 0)),        # ids
            pl.BlockSpec((eff_tile, h), lambda i: (i, 0)),        # mention emb
            pl.BlockSpec((num_types, h), lambda i: (0, 0)),       # emb table
            pl.BlockSpec((2, h), lambda i: (0, 0)),               # gamma/beta
        ],
        out_specs=pl.BlockSpec((eff_tile, h), lambda i: (i, 0)),
        compiler_params=pltpu.CompilerParams(
            dimension_semantics=("parallel",),
            vmem_limit_bytes=vmem_limit),
    )(ids2d, x, emb_table, gb)

    return out


def reference(batch_mention_emb, mention_type_ids, emb_table, gamma, beta):
    type_emb = emb_table[mention_type_ids]
    out = batch_mention_emb.astype(jnp.float32) + type_emb.astype(jnp.float32)
    mean = jnp.mean(out, axis=-1, keepdims=True)
    c = out - mean
    std = jnp.sqrt(jnp.sum(c * c, axis=-1, keepdims=True) / (out.shape[-1] - 1))
    return (c / (std + EPS)) * gamma + beta


if __name__ == "__main__":
    key = jax.random.PRNGKey(0)
    k1, k2, k3 = jax.random.split(key, 3)

    num_mentions = 16       # N (mentions across the batch, flattened)
    hidden_size = 32        # H
    num_ment_types = 8      # embedding table rows

    batch_mention_emb = jax.random.normal(k1, (num_mentions, hidden_size),
                                          dtype=jnp.float32)
    mention_type_ids = jax.random.randint(k2, (num_mentions,), 0,
                                          num_ment_types, dtype=jnp.int32)
    emb_table = jax.random.normal(k3, (num_ment_types, hidden_size),
                                  dtype=jnp.float32)
    gamma = jnp.ones((hidden_size,), dtype=jnp.float32)   # LayerNorm a_2 init
    beta = jnp.zeros((hidden_size,), dtype=jnp.float32)   # LayerNorm b_2 init

    out = mention_type_encoder(batch_mention_emb, mention_type_ids,
                               emb_table, gamma, beta)
    out = jax.block_until_ready(out)

    ref = reference(batch_mention_emb, mention_type_ids, emb_table, gamma, beta)
    assert out.shape == (num_mentions, hidden_size)
    assert jnp.allclose(out, ref, atol=1e-5, rtol=1e-5), "mismatch vs reference"

    print("KERNEL_OK")
</pallas_src>

<mosaic_0001>
module attributes {stable_mosaic.version = 11 : i64} {
  func.func @_mention_type_encoder_kernel(%arg0: i32, %arg1: memref<8x1xi32, #tpu.memory_space<vmem>>, %arg2: memref<8x32xf32, #tpu.memory_space<vmem>>, %arg3: memref<8x32xf32, #tpu.memory_space<vmem>>, %arg4: memref<2x32xf32, #tpu.memory_space<vmem>>, %arg5: memref<8x32xf32, #tpu.memory_space<vmem>>) attributes {dimension_semantics = [#tpu.dimension_semantics<parallel>], iteration_bounds = array<i64: 2>, scalar_prefetch = 0 : i64, scratch_operands = 0 : i64, tpu.core_type = #tpu.core_type<tc>, window_params = [{transform_indices = @transform_0, window_bounds = array<i64: 8, 1>}, {transform_indices = @transform_1, window_bounds = array<i64: 8, 32>}, {pipeline_mode = #tpu.pipeline_mode<synchronous>, transform_indices = @transform_2, window_bounds = array<i64: 8, 32>}, {pipeline_mode = #tpu.pipeline_mode<synchronous>, transform_indices = @transform_3, window_bounds = array<i64: 2, 32>}, {transform_indices = @transform_4, window_bounds = array<i64: 8, 32>}]} {
    %c0 = arith.constant 0 : index
    %c0_0 = arith.constant 0 : index
    %0 = vector.load %arg2[%c0, %c0_0] : memref<8x32xf32, #tpu.memory_space<vmem>>, vector<8x32xf32>
    %c0_1 = arith.constant 0 : index
    %c0_2 = arith.constant 0 : index
    %1 = vector.load %arg1[%c0_1, %c0_2] : memref<8x1xi32, #tpu.memory_space<vmem>>, vector<8x1xi32>
    %2 = tpu.iota {dimensions = array<i32: 1>} : vector<8x8xi32>
    %3 = vector.broadcast %1 : vector<8x1xi32> to vector<8x8xi32>
    %4 = arith.cmpi eq, %3, %2 : vector<8x8xi32>
    %5 = arith.extui %4 : vector<8x8xi1> to vector<8x8xi32>
    %6 = arith.sitofp %5 : vector<8x8xi32> to vector<8x8xf32>
    %c0_3 = arith.constant 0 : index
    %c0_4 = arith.constant 0 : index
    %7 = vector.load %arg3[%c0_3, %c0_4] : memref<8x32xf32, #tpu.memory_space<vmem>>, vector<8x32xf32>
    %cst = arith.constant dense<0.000000e+00> : vector<8x32xf32>
    %8 = tpu.matmul %6, %7, %cst {dimension_numbers = #tpu.dot_dimension_numbers<[1], [0], [0], [1], [0, 0, 1, 1], [], []>} : vector<8x8xf32>, vector<8x32xf32>, vector<8x32xf32> -> vector<8x32xf32>
    %9 = arith.addf %0, %8 : vector<8x32xf32>
    %cst_5 = arith.constant dense<0.000000e+00> : vector<8xf32>
    %10 = vector.multi_reduction <add>, %9, %cst_5 [1] : vector<8x32xf32> to vector<8xf32>
    %11 = vector.shape_cast %10 : vector<8xf32> to vector<8x1xf32>
    %cst_6 = arith.constant 3.125000e-02 : f32
    %12 = vector.broadcast %cst_6 : f32 to vector<8x1xf32>
    %13 = arith.mulf %11, %12 : vector<8x1xf32>
    %14 = vector.broadcast %13 : vector<8x1xf32> to vector<8x32xf32>
    %15 = arith.subf %9, %14 : vector<8x32xf32>
    %16 = arith.mulf %15, %15 : vector<8x32xf32>
    %cst_7 = arith.constant dense<0.000000e+00> : vector<8xf32>
    %17 = vector.multi_reduction <add>, %16, %cst_7 [1] : vector<8x32xf32> to vector<8xf32>
    %18 = vector.shape_cast %17 : vector<8xf32> to vector<8x1xf32>
    %cst_8 = arith.constant 0.0322580636 : f32
    %19 = vector.broadcast %cst_8 : f32 to vector<8x1xf32>
    %20 = arith.mulf %18, %19 : vector<8x1xf32>
    %21 = math.sqrt %20 : vector<8x1xf32>
    %cst_9 = arith.constant 9.99999997E-7 : f32
    %22 = vector.broadcast %cst_9 : f32 to vector<8x1xf32>
    %23 = arith.addf %21, %22 : vector<8x1xf32>
    %24 = tpu.reciprocal %23 : vector<8x1xf32> -> vector<8x1xf32>
    %c0_10 = arith.constant 0 : index
    %c0_11 = arith.constant 0 : index
    %25 = vector.load %arg4[%c0_10, %c0_11] : memref<2x32xf32, #tpu.memory_space<vmem>>, vector<2x32xf32>
    %26 = vector.extract_strided_slice %25 {offsets = [0, 0], sizes = [1, 32], strides = [1, 1]} : vector<2x32xf32> to vector<1x32xf32>
    %27 = vector.extract_strided_slice %25 {offsets = [1, 0], sizes = [1, 32], strides = [1, 1]} : vector<2x32xf32> to vector<1x32xf32>
    %28 = vector.broadcast %24 : vector<8x1xf32> to vector<8x32xf32>
    %29 = arith.mulf %15, %28 : vector<8x32xf32>
    %30 = vector.broadcast %26 : vector<1x32xf32> to vector<8x32xf32>
    %31 = arith.mulf %29, %30 : vector<8x32xf32>
    %32 = vector.broadcast %27 : vector<1x32xf32> to vector<8x32xf32>
    %33 = arith.addf %31, %32 : vector<8x32xf32>
    %c0_12 = arith.constant 0 : index
    %c0_13 = arith.constant 0 : index
    %34 = vector.load %arg5[%c0_12, %c0_13] : memref<8x32xf32, #tpu.memory_space<vmem>>, vector<8x32xf32>
    tpu.vector_store %arg5[%c0_12, %c0_13], %33 {strides = array<i32>} : memref<8x32xf32, #tpu.memory_space<vmem>>, vector<8x32xf32>,
    return
  }
  func.func @transform_0(%arg0: i32) -> (i32, i32) {
    %c0_i32 = arith.constant 0 : i32
    %c0_i32_0 = arith.constant 0 : i32
    return %arg0, %c0_i32 : i32, i32
  }
  func.func @transform_1(%arg0: i32) -> (i32, i32) {
    %c0_i32 = arith.constant 0 : i32
    %c0_i32_0 = arith.constant 0 : i32
    return %arg0, %c0_i32 : i32, i32
  }
  func.func @transform_2(%arg0: i32) -> (i32, i32) {
    %c0_i32 = arith.constant 0 : i32
    %c0_i32_0 = arith.constant 0 : i32
    %c0_i32_1 = arith.constant 0 : i32
    return %c0_i32, %c0_i32_0 : i32, i32
  }
  func.func @transform_3(%arg0: i32) -> (i32, i32) {
    %c0_i32 = arith.constant 0 : i32
    %c0_i32_0 = arith.constant 0 : i32
    %c0_i32_1 = arith.constant 0 : i32
    return %c0_i32, %c0_i32_0 : i32, i32
  }
  func.func @transform_4(%arg0: i32) -> (i32, i32) {
    %c0_i32 = arith.constant 0 : i32
    %c0_i32_0 = arith.constant 0 : i32
    return %arg0, %c0_i32 : i32, i32
  }
}

</mosaic_0001>

<llo_original>
// kernel: tpu_custom_call.1
$region0: #{tpu_custom_call.1}
  #allocation0 [shape = 'u32[]', space=smem, size = 0x4, offset = 0x4, fixed_abs, tag = 'smem constant byte address 0x4 - core index']
  #allocation1 [shape = 'u32[144,128]{1,0:T(1,128)}', space=vmem, size = 0x12000, scoped, tag = 'internal scratch']
  %s0 = inlined_call_operand.vmem [shape: s32[16,1], index: 0, kind: input, shape index: {}]
  %s1 = inlined_call_operand.vmem [shape: f32[16,32], index: 1, kind: input, shape index: {}]
  %s2 = inlined_call_operand.vmem [shape: f32[8,32], index: 2, kind: input, shape index: {}]
  %s3 = inlined_call_operand.vmem [shape: f32[2,32], index: 3, kind: input, shape index: {}]
  %s4 = inlined_call_operand.hbm [shape: f32[16,32], index: 4, kind: output, shape index: {}]
  %s5 = sld [smem:[#allocation0]]
  $region49: #{tpu_custom_call.1} parent=0
    _
  %s7 = ssub.s32 1, %s5
  %s8 = scalar_select 0, %s7, %s5
  $region1: #{tpu_custom_call.1} parent=0
    #allocation2 [shape = 'u8[8192]{0}', space=vmem, size = 0x2000, scoped, tag = 'output window, operand 0']
    #allocation3 [shape = 's32[2]{0}', space=sflag, size = 0x8, scoped, tag = 'scoped memory for tpu_custom_call.1']
    %9 = vsyncpa [#allocation3], 0
    %s10 = scalar_lea.sflag [#allocation3], 1
    %11 = vsyncpa %s10, 0
    loop: start=0, step=1, limit=4
    $region2: #{tpu_custom_call.1} parent=1 // loop_pre_header
      _
    $region3: #{tpu_custom_call.1} parent=1 // loop_header
      %s13 = sphi 0, %s17
      %p14 = scmp.ge.s32.totalorder %s13, 4
      %s23 = sphi 0, %s25
      %s26 = sphi 0, %s23
      %s27 = sphi 0, %s26
      %s43 = sphi 0, %s27
      %s49 = sphi 0, %s51
      %s52 = sphi 0, %s49
      %s53 = sphi 0, %s52
      %s69 = sphi 0, %s53
      %s73 = sphi 0, %s73
      %s75 = sphi 0, %s73
      %s76 = sphi 0, %s75
      %s90 = sphi 0, %s76
      %s94 = sphi 0, %s94
      %s96 = sphi 0, %s94
      %s97 = sphi 0, %s96
      %s111 = sphi 0, %s97
      %s117 = sphi 0, %s119
      %s120 = sphi 0, %s117
      %s121 = sphi 0, %s120
      %s137 = sphi 0, %s121
    $region4: #{tpu_custom_call.1} parent=1 // loop_header_branch
      %16 = sbr.rel (%p14) target = $region8
    $region5: #{tpu_custom_call.1} parent=1 // loop_body
      %s18 = ssub.s32 %s13, 1
      %s19 = ssub.s32 %s13, 2
      %s20 = sadd.s32 %s13, 1
      %s21 = ssub.s32 %s13, %s20
      %p22 = scmp.eq.s32.totalorder %s21, 0
      %s24 = sadd.s32 %s23, 1
      %s25 = scalar_select %p22, %s23, %s24
      %p28 = pneg %p22
      %p29 = scmp.eq.s32.totalorder %s13, 1
      %p30 = por %p28, %p29
      %p31 = scmp.ne.s32.totalorder %s23, %s26
      %p32 = scmp.eq.s32.totalorder %s13, 0
      %p33 = por %p31, %p32
      %p34 = scmp.ne.s32.totalorder %s23, %s26
      %p35 = scmp.eq.s32.totalorder %s18, 1
      %p36 = por %p34, %p35
      %p37 = scmp.ne.s32.totalorder %s26, %s27
      %p38 = scmp.eq.s32.totalorder %s18, 0
      %p39 = por %p37, %p38
      %p40 = scmp.ne.s32.totalorder %s26, %s27
      %p41 = scmp.eq.s32.totalorder %s19, 1
      %p42 = por %p40, %p41
      %p44 = scmp.ne.s32.totalorder %s27, %s43
      %p45 = scmp.eq.s32.totalorder %s19, 0
      %p46 = por %p44, %p45
      %s47 = ssub.s32 %s13, %s20
      %p48 = scmp.eq.s32.totalorder %s47, 0
      %s50 = sadd.s32 %s49, 1
      %s51 = scalar_select %p48, %s49, %s50
      %p54 = pneg %p48
      %p55 = scmp.eq.s32.totalorder %s13, 1
      %p56 = por %p54, %p55
      %p57 = scmp.ne.s32.totalorder %s49, %s52
      %p58 = scmp.eq.s32.totalorder %s13, 0
      %p59 = por %p57, %p58
      %p60 = scmp.ne.s32.totalorder %s49, %s52
      %p61 = scmp.eq.s32.totalorder %s18, 1
      %p62 = por %p60, %p61
      %p63 = scmp.ne.s32.totalorder %s52, %s53
      %p64 = scmp.eq.s32.totalorder %s18, 0
      %p65 = por %p63, %p64
      %p66 = scmp.ne.s32.totalorder %s52, %s53
      %p67 = scmp.eq.s32.totalorder %s19, 1
      %p68 = por %p66, %p67
      %p70 = scmp.ne.s32.totalorder %s53, %s69
      %p71 = scmp.eq.s32.totalorder %s19, 0
      %p72 = por %p70, %p71
      %s74 = sadd.s32 %s73, 1
      %p77 = scmp.eq.s32.totalorder %s13, 1
      %p78 = scmp.ne.s32.totalorder %s73, %s75
      %p79 = scmp.eq.s32.totalorder %s13, 0
      %p80 = por %p78, %p79
      %p81 = scmp.ne.s32.totalorder %s73, %s75
      %p82 = scmp.eq.s32.totalorder %s18, 1
      %p83 = por %p81, %p82
      %p84 = scmp.ne.s32.totalorder %s75, %s76
      %p85 = scmp.eq.s32.totalorder %s18, 0
      %p86 = por %p84, %p85
      %p87 = scmp.ne.s32.totalorder %s75, %s76
      %p88 = scmp.eq.s32.totalorder %s19, 1
      %p89 = por %p87, %p88
      %p91 = scmp.ne.s32.totalorder %s76, %s90
      %p92 = scmp.eq.s32.totalorder %s19, 0
      %p93 = por %p91, %p92
      %s95 = sadd.s32 %s94, 1
      %p98 = scmp.eq.s32.totalorder %s13, 1
      %p99 = scmp.ne.s32.totalorder %s94, %s96
      %p100 = scmp.eq.s32.totalorder %s13, 0
      %p101 = por %p99, %p100
      %p102 = scmp.ne.s32.totalorder %s94, %s96
      %p103 = scmp.eq.s32.totalorder %s18, 1
      %p104 = por %p102, %p103
      %p105 = scmp.ne.s32.totalorder %s96, %s97
      %p106 = scmp.eq.s32.totalorder %s18, 0
      %p107 = por %p105, %p106
      %p108 = scmp.ne.s32.totalorder %s96, %s97
      %p109 = scmp.eq.s32.totalorder %s19, 1
      %p110 = por %p108, %p109
      %p112 = scmp.ne.s32.totalorder %s97, %s111
      %p113 = scmp.eq.s32.totalorder %s19, 0
      %p114 = por %p112, %p113
      %s115 = ssub.s32 %s13, %s20
      %p116 = scmp.eq.s32.totalorder %s115, 0
      %s118 = sadd.s32 %s117, 1
      %s119 = scalar_select %p116, %s117, %s118
      %p122 = pneg %p116
      %p123 = scmp.eq.s32.totalorder %s13, 1
      %p124 = por %p122, %p123
      %p125 = scmp.ne.s32.totalorder %s117, %s120
      %p126 = scmp.eq.s32.totalorder %s13, 0
      %p127 = por %p125, %p126
      %p128 = scmp.ne.s32.totalorder %s117, %s120
      %p129 = scmp.eq.s32.totalorder %s18, 1
      %p130 = por %p128, %p129
      %p131 = scmp.ne.s32.totalorder %s120, %s121
      %p132 = scmp.eq.s32.totalorder %s18, 0
      %p133 = por %p131, %p132
      %p134 = scmp.ne.s32.totalorder %s120, %s121
      %p135 = scmp.eq.s32.totalorder %s19, 1
      %p136 = por %p134, %p135
      %p138 = scmp.ne.s32.totalorder %s121, %s137
      %p139 = scmp.eq.s32.totalorder %s19, 0
      %p140 = por %p138, %p139
      %p141 = scmp.le.s32.totalorder 1, %s13
      %p142 = scmp.lt.s32.totalorder %s13, 3
      %p143 = pnand %p141, %p142
      %p144 = pneg %p143
      // Predicated region
      $region9: #{tpu_custom_call.1} parent=5 // pred_check
        _
      $region10: #{tpu_custom_call.1} parent=5 // pred_check_branch
        %146 = sbr.rel (%p143) target = $region12
      $region11: #{tpu_custom_call.1} parent=5 // pred_region
        %s147 = ssub.s32 %s13, 1
        // Predicated region
        $region13: #{tpu_custom_call.1} parent=11 // pred_check
          %p148 = pneg %p86
        $region14: #{tpu_custom_call.1} parent=11 // pred_check_branch
          %150 = sbr.rel (%p148) target = $region16
        $region15: #{tpu_custom_call.1} parent=11 // pred_region
          _
        $region16: #{tpu_custom_call.1} parent=11 // pred_fallthru
          _
        // Predicated region
        $region17: #{tpu_custom_call.1} parent=11 // pred_check
          %p151 = pneg %p107
        $region18: #{tpu_custom_call.1} parent=11 // pred_check_branch
          %153 = sbr.rel (%p151) target = $region20
        $region19: #{tpu_custom_call.1} parent=11 // pred_region
          _
        $region20: #{tpu_custom_call.1} parent=11 // pred_fallthru
          _
      $region12: #{tpu_custom_call.1} parent=5 // pred_fallthru
        _
      %p154 = scmp.lt.s32.totalorder %s13, 2
      // Predicated region
      $region21: #{tpu_custom_call.1} parent=5 // pred_check
        %p155 = pneg %p154
      $region22: #{tpu_custom_call.1} parent=5 // pred_check_branch
        %157 = sbr.rel (%p155) target = $region24
      $region23: #{tpu_custom_call.1} parent=5 // pred_region
        // Predicated region
        $region25: #{tpu_custom_call.1} parent=23 // pred_check
          %p158 = pneg %p33
        $region26: #{tpu_custom_call.1} parent=23 // pred_check_branch
          %160 = sbr.rel (%p158) target = $region28
        $region27: #{tpu_custom_call.1} parent=23 // pred_region
          %p161 = scmp.lt.s32.totalorder %s13, 1
          %s162 = scalar_select %p161, %s13, 1
          %s163 = smul.addr %s162, 8
          %s164 = scalar_lea.vmem %s0, %s163
        $region28: #{tpu_custom_call.1} parent=23 // pred_fallthru
          _
        // Predicated region
        $region29: #{tpu_custom_call.1} parent=23 // pred_check
          %p165 = pneg %p59
        $region30: #{tpu_custom_call.1} parent=23 // pred_check_branch
          %167 = sbr.rel (%p165) target = $region32
        $region31: #{tpu_custom_call.1} parent=23 // pred_region
          %p168 = scmp.lt.s32.totalorder %s13, 1
          %s169 = scalar_select %p168, %s13, 1
          %s170 = smul.addr %s169, 8
          %s171 = scalar_lea.vmem %s1, %s170
        $region32: #{tpu_custom_call.1} parent=23 // pred_fallthru
          _
      $region24: #{tpu_custom_call.1} parent=5 // pred_fallthru
        _
      %p172 = scmp.le.s32.totalorder 1, %s13
      %p173 = scmp.lt.s32.totalorder %s13, 3
      %p174 = pnand %p172, %p173
      %p175 = pneg %p174
      // Predicated region
      $region33: #{tpu_custom_call.1} parent=5 // pred_check
        _
      $region34: #{tpu_custom_call.1} parent=5 // pred_check_branch
        %177 = sbr.rel (%p174) target = $region36
      $region35: #{tpu_custom_call.1} parent=5 // pred_region
        %s178 = ssub.s32 %s13, 1
        %p179 = scmp.lt.s32.totalorder %s18, 1
        %s180 = scalar_select %p179, %s18, 1
        %s181 = smul.addr %s180, 8
        %s182 = scalar_lea.vmem %s0, %s181
        %p183 = pneg %p39
        %p184 = pneg %p36
        %p185 = scmp.lt.s32.totalorder %s18, 1
        %s186 = scalar_select %p185, %s18, 1
        %s187 = smul.addr %s186, 8
        %s188 = scalar_lea.vmem %s1, %s187
        %p189 = pneg %p65
        %p190 = pneg %p62
        %p191 = pneg %p86
        %p192 = pneg %p83
        %p193 = pneg %p107
        %p194 = pneg %p104
        %p195 = pneg %p133
        %p196 = pneg %p130
        %s197 = sand.u32 %s120, 1
        %s198 = scalar_lea.sflag [#allocation3], %s197
        %s199 = sand.u32 %s120, 1
        %s200 = smul.addr %s199, 8
        %s201 = scalar_lea.vmem [#allocation2], %s200
        %p202 = scmp.lt.s32.totalorder %s18, 1
        %s203 = scalar_select %p202, %s18, 1
        %s204 = smul.addr %s203, 8
        %s205 = scalar_lea.vmem %s0, %s204
        %p206 = scmp.lt.s32.totalorder %s18, 1
        %s207 = scalar_select %p206, %s18, 1
        %s208 = smul.addr %s207, 8
        %s209 = scalar_lea.vmem %s1, %s208
        %v210 = vld [vmem:[%s209] sm:$0xff]
        %v211 = vld [vmem:[%s205] sm:$0xff]
        %v212 = vlaneseq
        %v213 = vand.u32 %v212, 127
        %214 = vset.pattern.permute.xlu0 0
        %215 = vperm.xlu0 %214, %v211
        %v216 = vpop.permute.xlu0 %215
        %vm217 = vcmp.eq.s32.totalorder %v216, %v213
        %v218 = vsel %vm217, 1, 0
        %v219 = vcvt.s32.f32 %v218
        %v220 = vld [vmem:[%s2] sm:$0xff]
        %vm221 = vcmask 64512
        %v223 = vsel %vm221, %v219, 0
        %225 = vmatprep.subr.mxu0 0.0
        %226 = vmatpush1.msra.mxu0 %v220
        %227 = vmatprep.subr.mxu0 0.0
        %228 = vmatpush1.msra.mxu0 0.0
        %229 = vmatprep.subr.mxu0 0.0
        %230 = vmatpush1.msra.mxu0 0.0
        %231 = vmatprep.subr.mxu0 0.0
        %232 = vmatpush1.msra.mxu0 0.0
        %233 = vmatprep.subr.mxu0 0.0
        %234 = vmatpush1.msra.mxu0 0.0
        %235 = vmatprep.subr.mxu0 0.0
        %236 = vmatpush1.msra.mxu0 0.0
        %237 = vmatprep.subr.mxu0 0.0
        %238 = vmatpush1.msra.mxu0 0.0
        %239 = vmatprep.subr.mxu0 0.0
        %240 = vmatpush1.msra.mxu0 0.0
        %241 = vmatprep.subr.mxu0 0.0
        %242 = vmatpush1.msra.mxu0 0.0
        %243 = vmatprep.subr.mxu0 0.0
        %244 = vmatpush1.msra.mxu0 0.0
        %245 = vmatprep.subr.mxu0 0.0
        %246 = vmatpush1.msra.mxu0 0.0
        %247 = vmatprep.subr.mxu0 0.0
        %248 = vmatpush1.msra.mxu0 0.0
        %249 = vmatprep.subr.mxu0 0.0
        %250 = vmatpush1.msra.mxu0 0.0
        %251 = vmatprep.subr.mxu0 0.0
        %252 = vmatpush1.msra.mxu0 0.0
        %253 = vmatprep.subr.mxu0 0.0
        %254 = vmatpush1.msra.mxu0 0.0
        %255 = vmatprep.subr.mxu0 0.0
        %256 = vmatpush1.msra.mxu0 0.0
        %257 = vmatprep.subr.mxu0 0.0
        %258 = vmatpush1.msra.mxu0 0.0
        %259 = vmatprep.subr.mxu0 0.0
        %260 = vmatpush1.msra.mxu0 0.0
        %261 = vmatprep.subr.mxu0 0.0
        %262 = vmatpush1.msra.mxu0 0.0
        %263 = vmatprep.subr.mxu0 0.0
        %264 = vmatpush1.msra.mxu0 0.0
        %265 = vmatprep.subr.mxu0 0.0
        %266 = vmatpush1.msra.mxu0 0.0
        %267 = vmatprep.subr.mxu0 0.0
        %268 = vmatpush1.msra.mxu0 0.0
        %269 = vmatprep.subr.mxu0 0.0
        %270 = vmatpush1.msra.mxu0 0.0
        %271 = vmatprep.subr.mxu0 0.0
        %272 = vmatpush1.msra.mxu0 0.0
        %273 = vmatprep.subr.mxu0 0.0
        %274 = vmatpush1.msra.mxu0 0.0
        %275 = vmatprep.subr.mxu0 0.0
        %276 = vmatpush1.msra.mxu0 0.0
        %277 = vmatprep.subr.mxu0 0.0
        %278 = vmatpush1.msra.mxu0 0.0
        %279 = vmatprep.subr.mxu0 0.0
        %280 = vmatpush1.msra.mxu0 0.0
        %281 = vmatprep.subr.mxu0 0.0
        %282 = vmatpush1.msra.mxu0 0.0
        %283 = vmatprep.subr.mxu0 0.0
        %284 = vmatpush1.msra.mxu0 0.0
        %285 = vmatprep.subr.mxu0 0.0
        %286 = vmatpush1.msra.mxu0 0.0
        %287 = vmatprep.subr.mxu0 0.0
        %288 = vmatpush1.msra.mxu0 0.0
        %289 = vmatprep.mubr.f32.mxu0 0.0
        %290 = vmatmul.mubr.f32.gmra.mrb[0].mxu0 %v223
        %v291 = vpop.f32.mrb[0].mxu0
        %v292 = vadd.f32 0.0, %v291
        %v293 = vpop.f32.mrb[0].mxu0
        %294 = vdwg.mxu0
        %v295 = vadd.f32 %v210, %v292
        %vm296 = vcmask 261120
        %v297 = vsel %vm296, %v295, 0.0
        %298 = vadd.xlane.f32.xlu0 %v297
        %v299 = vpop.xlane.xlu0 %298
        %v300 = vmul.f32 %v299, 0.03125
        %v301 = vsub.f32 %v295, %v300
        %v302 = vmul.f32 %v301, %v301
        %v303 = vsel %vm296, %v302, 0.0
        %304 = vadd.xlane.f32.xlu0 %v303
        %v305 = vpop.xlane.xlu0 %304
        %v306 = vmul.f32 %v305, 0.032258064
        %v307 = vrsqrt.pop %v306
        %v308 = vmul.f32 %v306, %v307
        %vm309 = vcmp.eq.f32.partialorder %v306, inf
        %v310 = vsel %vm309, %v306, %v308
        %vm311 = vcmp.eq.f32.partialorder %v306, 0.0
        %v312 = vand.u32 %v306, 2147483648
        %v313 = vsel %vm311, %v312, %v310
        %v314 = vadd.f32 %v313, 1e-06
        %v315 = vrcp.pop %v314
        %v316 = vld [vmem:[%s3] sm:$0x3]
        %v317 = vmul.f32 %v301, %v315
        %v318 = vlaneseq
        %v319 = vshrl.u32 %v318, 7
        %v320 = vsub.s32 0, %v319
        %v321 = vrot.slane %v316, %v320
        %v322 = vmul.f32 %v317, %v321
        %v323 = vlaneseq
        %v324 = vshrl.u32 %v323, 7
        %v325 = vsub.s32 1, %v324
        %v326 = vrot.slane %v316, %v325
        %v327 = vadd.f32 %v322, %v326
        %328 = vst.msk [vmem:[%s201] sm:$0xff] %vm296, %v327
        %s329 = sand.u32 %s120, 1
        %s330 = scalar_lea.sflag [#allocation3], %s329
        %s331 = sand.u32 %s120, 1
        %s332 = smul.addr %s331, 8
        %s333 = scalar_lea.vmem [#allocation2], %s332
        // Predicated region
        $region37: #{tpu_custom_call.1} parent=35 // pred_check
          %p334 = pneg %p130
        $region38: #{tpu_custom_call.1} parent=35 // pred_check_branch
          %336 = sbr.rel (%p334) target = $region40
        $region39: #{tpu_custom_call.1} parent=35 // pred_region
          %s338 = ssub.s32 128, 128
          %339 = vsyncadd %s330, %s338
          %s340 = smul.addr %s18, 128
          %s341 = scalar_lea.hbm %s4, %s340
          %s343 = sshll.u32 %s333, 4
          %s344 = int_to_ptr.vmem [resolvable:$true] %s343
          %346 = dma.vmem_to_hbm [thread:$0]  %s344, 128, %s341, %s330
        $region40: #{tpu_custom_call.1} parent=35 // pred_fallthru
          _
      $region36: #{tpu_custom_call.1} parent=5 // pred_fallthru
        _
      %p347 = scmp.le.s32.totalorder 2, %s13
      // Predicated region
      $region41: #{tpu_custom_call.1} parent=5 // pred_check
        %p348 = pneg %p347
      $region42: #{tpu_custom_call.1} parent=5 // pred_check_branch
        %350 = sbr.rel (%p348) target = $region44
      $region43: #{tpu_custom_call.1} parent=5 // pred_region
        %s351 = ssub.s32 %s13, 2
        // Predicated region
        $region45: #{tpu_custom_call.1} parent=43 // pred_check
          %p352 = pneg %p136
        $region46: #{tpu_custom_call.1} parent=43 // pred_check_branch
          %354 = sbr.rel (%p352) target = $region48
        $region47: #{tpu_custom_call.1} parent=43 // pred_region
          %s355 = sand.u32 %s121, 1
          %s356 = scalar_lea.sflag [#allocation3], %s355
          %s357 = sand.u32 %s121, 1
          %s358 = smul.addr %s357, 8
          %s359 = scalar_lea.vmem [#allocation2], %s358
          %360 = dma.done %s356, 128
        $region48: #{tpu_custom_call.1} parent=43 // pred_fallthru
          _
      $region44: #{tpu_custom_call.1} parent=5 // pred_fallthru
        _
    $region6: #{tpu_custom_call.1} parent=1 // loop_footer
      %s17 = sadd.s32 1, %s13
    $region7: #{tpu_custom_call.1} parent=1 // loop_footer_branch
      %12 = sbr.rel target = $region3
    $region8: #{tpu_custom_call.1} parent=1 // loop_exit
      _
    %361 = vsyncpa [#allocation3], 1
    %s362 = scalar_lea.sflag [#allocation3], 1
    %363 = vsyncpa %s362, 1

</llo_original>
